<compile_context>
chip_gen: v6e
topology: v6e:2x2x1
jax: 0.10.0
libtpu: 0.0.40
codegen_flags: <defaults>
</compile_context>

<pallas_src>
import functools

import jax
import jax.numpy as jnp
from jax.experimental import pallas as pl
from jax.experimental.pallas import tpu as pltpu

_LANE = 128
_MAX_BLOCK_ROWS = 2048           # (2048, 128) f32 block = 1 MiB per pipeline buffer


def _choose_tiling(n):
    """Lane-dense slab for n elements: (rows, 128) with rows % block_rows == 0."""
    rows_min = -(-n // _LANE)
    if rows_min <= _MAX_BLOCK_ROWS:
        rows = max(8, -(-rows_min // 8) * 8)       # single big block, sublane aligned
        block_rows = rows
    else:
        block_rows = _MAX_BLOCK_ROWS
        rows = -(-rows_min // block_rows) * block_rows
    return rows, block_rows


def _kth_smallest(vals, k):
    """Exact k-th smallest (1-based) of a 1-D array via the cheaper top_k side."""
    n = vals.shape[0]
    if k <= n - k + 1:
        neg_topk, _ = jax.lax.top_k(-vals, k)      # k smallest of vals (negated)
        return -neg_topk[k - 1]
    kk = n - k + 1                                 # k-th smallest == kk-th largest
    topk, _ = jax.lax.top_k(vals, kk)
    return topk[kk - 1]


def _dropconnect_kernel(thr_ref, x_ref, m_ref, o_ref):
    # thr_ref: (1,1) f32 in SMEM; x_ref/m_ref/o_ref: (block_rows, 128) VMEM tiles.
    thr = thr_ref[0, 0]
    o_ref[...] = jnp.where(m_ref[...] > thr, x_ref[...], 0)


@functools.partial(jax.jit, static_argnames=("min_num_sampled",
                                             "max_num_droppings",
                                             "training"))
def drop_connect(x, key, *, min_num_sampled=1, max_num_droppings=0.5,
                 training=True):
    """Pallas implementation of DropConnectLayer.forward (p is unused, as in torch)."""
    if not training:
        return x

    n = int(x.size)
    min_num_kept = n - int(n * max_num_droppings)
    min_num_kept = max(int(min_num_kept), int(min_num_sampled))

    rows, block_rows = _choose_tiling(n)

    # Uniform mask generated directly in the padded lane-dense slab shape
    # (no jnp.pad copy of the mask). Only the first n values enter the
    # order statistic.
    # TODO(synk): mask could be generated in-kernel with pltpu.prng_random_bits
    # to drop the HBM mask stream, but that changes the RNG stream vs jax.random.
    mask = jax.random.uniform(key, (rows, _LANE), dtype=jnp.float32)
    threshold = _kth_smallest(mask.reshape(-1)[:n], min_num_kept)
    threshold = threshold.reshape(1, 1).astype(jnp.float32)

    # x viewed row-major as the same slab, in its native dtype; pad only if
    # numel is not already a multiple of the lane width (zero-size pad here).
    pad = rows * _LANE - n
    flat_x = x.reshape(-1)
    if pad:
        flat_x = jnp.pad(flat_x, (0, pad))         # pad value 0 -> never "kept"
    x2d = flat_x.reshape(rows, _LANE)

    out = pl.pallas_call(
        _dropconnect_kernel,
        out_shape=jax.ShapeDtypeStruct((rows, _LANE), x.dtype),
        grid=(rows // block_rows,),
        in_specs=[
            pl.BlockSpec(memory_space=pltpu.MemorySpace.SMEM),       # threshold
            pl.BlockSpec((block_rows, _LANE), lambda i: (i, 0)),     # x tile
            pl.BlockSpec((block_rows, _LANE), lambda i: (i, 0)),     # mask tile
        ],
        out_specs=pl.BlockSpec((block_rows, _LANE), lambda i: (i, 0)),
        compiler_params=pltpu.CompilerParams(
            dimension_semantics=("parallel",)),
    )(threshold, x2d, mask)

    return out.reshape(-1)[:n].reshape(x.shape)


if __name__ == "__main__":
    key = jax.random.PRNGKey(0)
    kx, kmask = jax.random.split(key)

    # Small NCHW-like input: batch=2, channels=4, spatial=16x16.
    x = jax.random.normal(kx, (2, 4, 16, 16), dtype=jnp.float32)

    y = drop_connect(x, kmask, min_num_sampled=1, max_num_droppings=0.5,
                     training=True)
    y = jax.block_until_ready(y)

    # Plain-JAX reference mirroring the kernel's mask construction exactly.
    n = x.size
    min_num_kept = max(n - int(n * 0.5), 1)
    rows, _ = _choose_tiling(n)
    mask_ref = jax.random.uniform(kmask, (rows, _LANE), dtype=jnp.float32)
    mask_flat = mask_ref.reshape(-1)[:n]
    thr_ref = jnp.sort(mask_flat)[min_num_kept - 1]
    y_ref = x * (mask_flat.reshape(x.shape) > thr_ref).astype(x.dtype)
    assert jnp.allclose(y, y_ref), "mismatch vs reference"

    # Eval-mode path (identity).
    y_eval = drop_connect(x, kmask, training=False)
    assert jnp.allclose(y_eval, x)

    print("KERNEL_OK")
</pallas_src>

<mosaic_0001>
module attributes {stable_mosaic.version = 11 : i64} {
  func.func @_dropconnect_kernel(%arg0: i32, %arg1: memref<1x1xf32, #tpu.memory_space<smem>>, %arg2: memref<16x128xf32, #tpu.memory_space<vmem>>, %arg3: memref<16x128xf32, #tpu.memory_space<vmem>>, %arg4: memref<16x128xf32, #tpu.memory_space<vmem>>) attributes {dimension_semantics = [#tpu.dimension_semantics<parallel>], iteration_bounds = array<i64: 1>, scalar_prefetch = 0 : i64, scratch_operands = 0 : i64, tpu.core_type = #tpu.core_type<tc>, window_params = [{transform_indices = @transform_0, window_bounds = array<i64: 1, 1>}, {transform_indices = @transform_1, window_bounds = array<i64: 16, 128>}, {transform_indices = @transform_2, window_bounds = array<i64: 16, 128>}, {transform_indices = @transform_3, window_bounds = array<i64: 16, 128>}]} {
    %c0 = arith.constant 0 : index
    %c0_0 = arith.constant 0 : index
    %0 = memref.load %arg1[%c0, %c0_0] : memref<1x1xf32, #tpu.memory_space<smem>>
    %c0_1 = arith.constant 0 : index
    %c0_2 = arith.constant 0 : index
    %1 = vector.load %arg3[%c0_1, %c0_2] : memref<16x128xf32, #tpu.memory_space<vmem>>, vector<16x128xf32>
    %2 = vector.broadcast %0 : f32 to vector<16x128xf32>
    %3 = arith.cmpf ogt, %1, %2 : vector<16x128xf32>
    %c0_3 = arith.constant 0 : index
    %c0_4 = arith.constant 0 : index
    %4 = vector.load %arg2[%c0_3, %c0_4] : memref<16x128xf32, #tpu.memory_space<vmem>>, vector<16x128xf32>
    %c0_i32 = arith.constant 0 : i32
    %5 = arith.sitofp %c0_i32 : i32 to f32
    %6 = vector.broadcast %5 : f32 to vector<16x128xf32>
    %7 = arith.select %3, %4, %6 : vector<16x128xi1>, vector<16x128xf32>
    %c0_5 = arith.constant 0 : index
    %c0_6 = arith.constant 0 : index
    %8 = vector.load %arg4[%c0_5, %c0_6] : memref<16x128xf32, #tpu.memory_space<vmem>>, vector<16x128xf32>
    tpu.vector_store %arg4[%c0_5, %c0_6], %7 {strides = array<i32>} : memref<16x128xf32, #tpu.memory_space<vmem>>, vector<16x128xf32>,
    return
  }
  func.func @transform_0(%arg0: i32) -> (i32, i32) {
    %c0_i32 = arith.constant 0 : i32
    %c0_i32_0 = arith.constant 0 : i32
    %c0_i32_1 = arith.constant 0 : i32
    return %c0_i32, %c0_i32_0 : i32, i32
  }
  func.func @transform_1(%arg0: i32) -> (i32, i32) {
    %c0_i32 = arith.constant 0 : i32
    %c0_i32_0 = arith.constant 0 : i32
    return %arg0, %c0_i32 : i32, i32
  }
  func.func @transform_2(%arg0: i32) -> (i32, i32) {
    %c0_i32 = arith.constant 0 : i32
    %c0_i32_0 = arith.constant 0 : i32
    return %arg0, %c0_i32 : i32, i32
  }
  func.func @transform_3(%arg0: i32) -> (i32, i32) {
    %c0_i32 = arith.constant 0 : i32
    %c0_i32_0 = arith.constant 0 : i32
    return %arg0, %c0_i32 : i32, i32
  }
}

</mosaic_0001>

<llo_original>
// kernel: drop_connect.1
$region0: #{drop_connect.1}
  #allocation0 [shape = 'u32[]', space=smem, size = 0x4, offset = 0x4, fixed_abs, tag = 'smem constant byte address 0x4 - core index']
  #allocation1 [shape = 'u32[144,128]{1,0:T(1,128)}', space=vmem, size = 0x12000, scoped, tag = 'internal scratch']
  #allocation2 [shape = 'f32[1,1]{1,0:T(1,128)S(6)}', space=smem, size = 0x200, scoped, tag = 'scoped memory for drop_connect.1']
  %s0 = inlined_call_operand.<no memory space> [shape: f32[1,1], index: 0, kind: input, shape index: {}]
  %s1 = inlined_call_operand.vmem [shape: f32[16,128], index: 1, kind: input, shape index: {}]
  %s2 = inlined_call_operand.vmem [shape: f32[16,128], index: 2, kind: input, shape index: {}]
  %s3 = inlined_call_operand.vmem [shape: f32[16,128], index: 3, kind: output, shape index: {}]
  %s4 = sld [smem:[#allocation0]]
  $region22: #{drop_connect.1} parent=0
    _
  %s6 = ssub.s32 1, %s4
  %s7 = scalar_select 0, %s6, %s4
  %8 = sst [smem:[#allocation2]] %s0
  // Predicated region
  $region2: #{drop_connect.1} parent=0 // pred_check
    _
  $region3: #{drop_connect.1} parent=0 // pred_check_branch
    %10 = sbr.rel (0) target = $region5
  $region4: #{drop_connect.1} parent=0 // pred_region
    _
  $region5: #{drop_connect.1} parent=0 // pred_fallthru
    _
  // Predicated region
  $region6: #{drop_connect.1} parent=0 // pred_check
    _
  $region7: #{drop_connect.1} parent=0 // pred_check_branch
    %12 = sbr.rel (0) target = $region9
  $region8: #{drop_connect.1} parent=0 // pred_region
    _
  $region9: #{drop_connect.1} parent=0 // pred_fallthru
    _
  // Predicated region
  $region10: #{drop_connect.1} parent=0 // pred_check
    _
  $region11: #{drop_connect.1} parent=0 // pred_check_branch
    %14 = sbr.rel (0) target = $region13
  $region12: #{drop_connect.1} parent=0 // pred_region
    _
  $region13: #{drop_connect.1} parent=0 // pred_fallthru
    _
  %s15 = sld [smem:[#allocation2]]
  %v16 = vld [vmem:[%s2] sm:$0xff]
  %v17 = vld [vmem:[%s2 + $0x8] sm:$0xff]
  %v18 = vstv %s15
  %vm19 = vcmp.gt.f32.partialorder %v16, %v18
  %vm20 = vcmp.gt.f32.partialorder %v17, %v18
  %v21 = vld [vmem:[%s1] sm:$0xff]
  %v22 = vld [vmem:[%s1 + $0x8] sm:$0xff]
  %v23 = vsel %vm19, %v21, 0.0
  %v24 = vsel %vm20, %v22, 0.0
  %25 = vst [vmem:[%s3] sm:$0xff] %v23
  %26 = vst [vmem:[%s3 + $0x8] sm:$0xff] %v24
  // Predicated region
  $region14: #{drop_connect.1} parent=0 // pred_check
    _
  $region15: #{drop_connect.1} parent=0 // pred_check_branch
    %28 = sbr.rel (0) target = $region17
  $region16: #{drop_connect.1} parent=0 // pred_region
    _
  $region17: #{drop_connect.1} parent=0 // pred_fallthru
    _
  // Predicated region
  $region18: #{drop_connect.1} parent=0 // pred_check
    _
  $region19: #{drop_connect.1} parent=0 // pred_check_branch
    %30 = sbr.rel (0) target = $region21
  $region20: #{drop_connect.1} parent=0 // pred_region
    _
  $region21: #{drop_connect.1} parent=0 // pred_fallthru
    _

</llo_original>
